<compile_context>
chip_gen: v7x
topology: tpu7x:2x2x1
jax: 0.10.0
libtpu: 0.0.40
codegen_flags: <defaults>
</compile_context>

<pallas_src>
import functools

import jax
import jax.numpy as jnp
from jax.experimental import pallas as pl
from jax.experimental.pallas import tpu as pltpu


def _round_up(v, m):
    return ((v + m - 1) // m) * m


def _pick_tile(dim, target, align):
    """Largest multiple of `align` that divides `dim` and is <= `target`.

    `dim` must already be a multiple of `align`.  Returns `dim` itself when it
    fits under the target (single tile -> no grid axis / no extra padding)."""
    if dim <= target:
        return dim
    best = align
    cand = align
    while cand <= target:
        if dim % cand == 0:
            best = cand
        cand += align
    return best


def _tile_vmem_bytes(tm, tn, tk):
    # bf16 x (tm,tk) + bf16 w (tk,tn) + f32 bias (1,tn) + f32 out (tm,tn),
    # everything double-buffered by the BlockSpec pipeline.
    return 2 * (2 * tm * tk + 2 * tk * tn + 4 * tn + 4 * tm * tn)


def _vmem_limits():
    """Returns (vmem_limit_bytes for CompilerParams, tile working-set budget)."""
    cap = 64 * 1024 * 1024  # conservative default == v7x per-TensorCore VMEM
    try:
        info = pltpu.get_tpu_info()
        cap = int(getattr(info, "vmem_capacity_bytes", cap) or cap)
    except Exception:
        pass
    vmem_limit = min(3 * cap // 4, 100 * 1024 * 1024)   # ~48 MiB v7x, ~96 MiB v5e/v6e
    tile_budget = min(cap // 2, 48 * 1024 * 1024)       # ~32 MiB v7x, ~48 MiB v5e/v6e
    return vmem_limit, tile_budget


def _linear_relu_kernel_2d(x_ref, w_ref, b_ref, o_ref):
    # Whole reduction in one pass: no accumulator scratch, output written once.
    acc = jnp.dot(x_ref[...], w_ref[...], preferred_element_type=jnp.float32)
    o_ref[...] = jnp.maximum(acc + b_ref[...], 0.0).astype(o_ref.dtype)


def _linear_relu_kernel_3d(x_ref, w_ref, b_ref, o_ref):
    # K-reduction grid axis (last): accumulate directly into the f32 output
    # block, which stays VMEM-resident across the K axis (index map ignores k).
    k = pl.program_id(2)

    @pl.when(k == 0)
    def _():
        o_ref[...] = jnp.zeros_like(o_ref)

    o_ref[...] += jnp.dot(x_ref[...], w_ref[...], preferred_element_type=jnp.float32)

    @pl.when(k == pl.num_programs(2) - 1)
    def _():
        o_ref[...] = jnp.maximum(o_ref[...] + b_ref[...], 0.0).astype(o_ref.dtype)


@functools.partial(jax.jit, static_argnames=("tm", "tn", "tk"))
def linear_block_forward(x, weight, bias, *, tm=None, tn=None, tk=None):
    """relu(x @ weight.T + bias): bf16 MXU matmul with f32 accumulation.

    x:      (M, K)  -- (batch, in_planes)
    weight: (N, K)  -- PyTorch nn.Linear weight layout
    bias:   (N,)
    Returns (M, N) float32.  Optional tm/tn/tk overrides must be multiples of
    16 / 128 / 128 respectively.
    """
    M, K = x.shape
    N, K2 = weight.shape
    assert K == K2, (K, K2)
    assert bias.shape == (N,), bias.shape

    vmem_limit, tile_budget = _vmem_limits()

    # Round dims only to the hardware minimums (bf16 sublane 16, lane 128).
    Mp = _round_up(M, 16)
    Np = _round_up(N, 128)
    Kp = _round_up(K, 128)

    auto = tm is None and tn is None and tk is None
    if tm is None:
        tm = _pick_tile(Mp, 512, 16)
    if tn is None:
        tn = _pick_tile(Np, 512, 128)
    if auto and tm == Mp and tn == Np and Np >= 256:
        # Keep at least 2 parallel grid steps so both v7x TensorCores get work.
        tn = _pick_tile(Np, Np // 2, 128)
    if tk is None:
        if _tile_vmem_bytes(tm, tn, Kp) <= tile_budget:
            tk = Kp  # single K pass -> 2-D fully parallel grid
        else:
            avail = tile_budget - 2 * (4 * tn + 4 * tm * tn)
            max_tk = max(128, (avail // (4 * (tm + tn))) // 128 * 128)
            tk = _pick_tile(Kp, max_tk, 128)

    assert tm % 16 == 0 and tn % 128 == 0 and tk % 128 == 0, (tm, tn, tk)

    # User-supplied tiles may not divide the rounded dims -> pad up to them
    # (no-op for the auto-chosen divisor tiles).
    Mp = _round_up(Mp, tm)
    Np = _round_up(Np, tn)
    Kp = _round_up(Kp, tk)

    # Minimal padding, one-time weight transpose (fused with the bf16 cast by
    # XLA), bf16 inputs for the MXU.  Zero K-padding is exact; padded M/N
    # rows/cols are sliced off below.
    xp = jnp.pad(x, ((0, Mp - M), (0, Kp - K))).astype(jnp.bfloat16)
    wt = jnp.pad(weight, ((0, Np - N), (0, Kp - K))).T.astype(jnp.bfloat16)  # (Kp, Np)
    bp = jnp.pad(bias.astype(jnp.float32), (0, Np - N)).reshape(1, Np)

    gm, gn, gk = Mp // tm, Np // tn, Kp // tk

    cost = pl.CostEstimate(
        flops=2 * M * N * K,
        bytes_accessed=2 * Mp * Kp * gn + 2 * Kp * Np * gm + 4 * Mp * Np + 4 * Np,
        transcendentals=0,
    )

    if gk == 1:
        grid = (gm, gn)
        kernel = _linear_relu_kernel_2d
        in_specs = [
            pl.BlockSpec((tm, tk), lambda i, j: (i, 0)),   # x tile
            pl.BlockSpec((tk, tn), lambda i, j: (0, j)),   # weight^T tile (K, N)
            pl.BlockSpec((1, tn), lambda i, j: (0, j)),    # bias row
        ]
        out_specs = pl.BlockSpec((tm, tn), lambda i, j: (i, j))
        dim_sem = ("parallel", "parallel")
    else:
        grid = (gm, gn, gk)
        kernel = _linear_relu_kernel_3d
        in_specs = [
            pl.BlockSpec((tm, tk), lambda i, j, k: (i, k)),
            pl.BlockSpec((tk, tn), lambda i, j, k: (k, j)),
            pl.BlockSpec((1, tn), lambda i, j, k: (0, j)),
        ]
        out_specs = pl.BlockSpec((tm, tn), lambda i, j, k: (i, j))
        dim_sem = ("parallel", "parallel", "arbitrary")

    out_padded = pl.pallas_call(
        kernel,
        out_shape=jax.ShapeDtypeStruct((Mp, Np), jnp.float32),
        grid_spec=pltpu.PrefetchScalarGridSpec(
            num_scalar_prefetch=0,
            grid=grid,
            in_specs=in_specs,
            out_specs=out_specs,
        ),
        compiler_params=pltpu.CompilerParams(
            dimension_semantics=dim_sem,
            vmem_limit_bytes=vmem_limit,
        ),
        cost_estimate=cost,
    )(xp, wt, bp)

    if Mp == M and Np == N:
        return out_padded
    return out_padded[:M, :N]


def _reference(x, weight, bias):
    return jnp.maximum(x @ weight.T + bias, 0.0)


if __name__ == "__main__":
    key = jax.random.PRNGKey(0)
    k1, k2, k3, k4, k5, k6 = jax.random.split(key, 6)

    # --- Small shapes consistent with the module's forward: (batch, in_planes) ---
    batch, in_planes, out_planes = 8, 32, 64
    bound = (1.0 / in_planes) ** 0.5
    x = jax.random.normal(k1, (batch, in_planes), dtype=jnp.float32)
    weight = jax.random.uniform(k2, (out_planes, in_planes),
                                minval=-bound, maxval=bound, dtype=jnp.float32)
    bias = jax.random.uniform(k3, (out_planes,),
                              minval=-bound, maxval=bound, dtype=jnp.float32)

    out = jax.block_until_ready(linear_block_forward(x, weight, bias))
    ref = _reference(x, weight, bias)
    assert out.shape == (batch, out_planes), out.shape
    # bf16 inputs (f32 accumulation) -> slightly looser tolerance vs the f32 reference.
    assert jnp.allclose(out, ref, atol=5e-2, rtol=5e-2), \
        float(jnp.max(jnp.abs(out - ref)))

    # --- Medium shape forcing the 3-D (K-reduction, accumulate-into-output) path ---
    M2, K2, N2 = 128, 384, 256
    x2 = jax.random.normal(k4, (M2, K2), dtype=jnp.float32)
    w2 = jax.random.normal(k5, (N2, K2), dtype=jnp.float32) * 0.05
    b2 = jax.random.normal(k6, (N2,), dtype=jnp.float32) * 0.05

    out2 = jax.block_until_ready(
        linear_block_forward(x2, w2, b2, tm=128, tn=128, tk=128))
    ref2 = _reference(x2, w2, b2)
    assert out2.shape == (M2, N2), out2.shape
    err = float(jnp.max(jnp.abs(out2 - ref2)))
    scale = float(jnp.max(jnp.abs(ref2))) + 1e-6
    assert err / scale < 2e-2, (err, scale)

    print("KERNEL_OK")
</pallas_src>

<mosaic_0001>
module attributes {stable_mosaic.version = 11 : i64} {
  func.func @_linear_relu_kernel_2d(%arg0: i32, %arg1: i32, %arg2: memref<16x128xbf16, #tpu.memory_space<vmem>>, %arg3: memref<128x128xbf16, #tpu.memory_space<vmem>>, %arg4: memref<1x128xf32, #tpu.memory_space<vmem>>, %arg5: memref<16x128xf32, #tpu.memory_space<vmem>>) attributes {dimension_semantics = [#tpu.dimension_semantics<parallel>, #tpu.dimension_semantics<parallel>], iteration_bounds = array<i64: 1, 1>, scalar_prefetch = 0 : i64, scratch_operands = 0 : i64, tpu.core_type = #tpu.core_type<tc>, window_params = [{transform_indices = @transform_0, window_bounds = array<i64: 16, 128>}, {transform_indices = @transform_1, window_bounds = array<i64: 128, 128>}, {transform_indices = @transform_2, window_bounds = array<i64: 1, 128>}, {transform_indices = @transform_3, window_bounds = array<i64: 16, 128>}]} {
    %c0 = arith.constant 0 : index
    %c0_0 = arith.constant 0 : index
    %0 = vector.load %arg2[%c0, %c0_0] : memref<16x128xbf16, #tpu.memory_space<vmem>>, vector<16x128xbf16>
    %c0_1 = arith.constant 0 : index
    %c0_2 = arith.constant 0 : index
    %1 = vector.load %arg3[%c0_1, %c0_2] : memref<128x128xbf16, #tpu.memory_space<vmem>>, vector<128x128xbf16>
    %cst = arith.constant dense<0.000000e+00> : vector<16x128xf32>
    %2 = tpu.matmul %0, %1, %cst {dimension_numbers = #tpu.dot_dimension_numbers<[1], [0], [0], [1], [0, 0, 1, 1], [], []>} : vector<16x128xbf16>, vector<128x128xbf16>, vector<16x128xf32> -> vector<16x128xf32>
    %c0_3 = arith.constant 0 : index
    %c0_4 = arith.constant 0 : index
    %3 = vector.load %arg4[%c0_3, %c0_4] : memref<1x128xf32, #tpu.memory_space<vmem>>, vector<1x128xf32>
    %4 = vector.broadcast %3 : vector<1x128xf32> to vector<16x128xf32>
    %5 = arith.addf %2, %4 : vector<16x128xf32>
    %cst_5 = arith.constant 0.000000e+00 : f32
    %6 = vector.broadcast %cst_5 : f32 to vector<16x128xf32>
    %7 = arith.maximumf %5, %6 : vector<16x128xf32>
    %c0_6 = arith.constant 0 : index
    %c0_7 = arith.constant 0 : index
    %8 = vector.load %arg5[%c0_6, %c0_7] : memref<16x128xf32, #tpu.memory_space<vmem>>, vector<16x128xf32>
    tpu.vector_store %arg5[%c0_6, %c0_7], %7 {strides = array<i32>} : memref<16x128xf32, #tpu.memory_space<vmem>>, vector<16x128xf32>,
    return
  }
  func.func @transform_0(%arg0: i32, %arg1: i32) -> (i32, i32) {
    %c0_i32 = arith.constant 0 : i32
    %c0_i32_0 = arith.constant 0 : i32
    return %arg0, %c0_i32 : i32, i32
  }
  func.func @transform_1(%arg0: i32, %arg1: i32) -> (i32, i32) {
    %c0_i32 = arith.constant 0 : i32
    %c0_i32_0 = arith.constant 0 : i32
    return %c0_i32, %arg1 : i32, i32
  }
  func.func @transform_2(%arg0: i32, %arg1: i32) -> (i32, i32) {
    %c0_i32 = arith.constant 0 : i32
    %c0_i32_0 = arith.constant 0 : i32
    return %c0_i32, %arg1 : i32, i32
  }
  func.func @transform_3(%arg0: i32, %arg1: i32) -> (i32, i32) {
    %c0_i32 = arith.constant 0 : i32
    return %arg0, %arg1 : i32, i32
  }
}

</mosaic_0001>

<llo_original>
// kernel: linear_block_forward.1
$region0: #{linear_block_forward.1}
  #allocation0 [shape = 'u32[]', space=smem, size = 0x4, offset = 0x4, fixed_abs, tag = 'smem constant byte address 0x4 - core index']
  #allocation1 [shape = 'u32[144,128]{1,0:T(1,128)}', space=vmem, size = 0x12000, scoped, tag = 'internal scratch']
  %s0 = inlined_call_operand.vmem [shape: bf16[16,128], index: 0, kind: input, shape index: {}]
  %s1 = inlined_call_operand.vmem [shape: bf16[128,128], index: 1, kind: input, shape index: {}]
  %s2 = inlined_call_operand.vmem [shape: f32[1,128], index: 2, kind: input, shape index: {}]
  %s3 = inlined_call_operand.vmem [shape: f32[16,128], index: 3, kind: output, shape index: {}]
  %s4 = sld [smem:[#allocation0]]
  $region22: #{linear_block_forward.1} parent=0
    _
  %s6 = ssub.s32 1, %s4
  %s7 = scalar_select 0, %s6, %s4
  // Predicated region
  $region2: #{linear_block_forward.1} parent=0 // pred_check
    _
  $region3: #{linear_block_forward.1} parent=0 // pred_check_branch
    %9 = sbr.rel (0) target = $region5
  $region4: #{linear_block_forward.1} parent=0 // pred_region
    _
  $region5: #{linear_block_forward.1} parent=0 // pred_fallthru
    _
  // Predicated region
  $region6: #{linear_block_forward.1} parent=0 // pred_check
    _
  $region7: #{linear_block_forward.1} parent=0 // pred_check_branch
    %11 = sbr.rel (0) target = $region9
  $region8: #{linear_block_forward.1} parent=0 // pred_region
    _
  $region9: #{linear_block_forward.1} parent=0 // pred_fallthru
    _
  // Predicated region
  $region10: #{linear_block_forward.1} parent=0 // pred_check
    _
  $region11: #{linear_block_forward.1} parent=0 // pred_check_branch
    %13 = sbr.rel (0) target = $region13
  $region12: #{linear_block_forward.1} parent=0 // pred_region
    _
  $region13: #{linear_block_forward.1} parent=0 // pred_fallthru
    _
  %v15 = vld [vmem:[%s0] sm:$0xf]
  %v16 = vld [vmem:[%s0 + $0x4] sm:$0xf]
  %v17 = vld [vmem:[%s1] sm:$0xf]
  %v18 = vld [vmem:[%s1 + $0x4] sm:$0xf]
  %v19 = vld [vmem:[%s1 + $0x8] sm:$0xf]
  %v20 = vld [vmem:[%s1 + $0xc] sm:$0xf]
  %v21 = vld [vmem:[%s1 + $0x10] sm:$0xf]
  %v22 = vld [vmem:[%s1 + $0x14] sm:$0xf]
  %v23 = vld [vmem:[%s1 + $0x18] sm:$0xf]
  %v24 = vld [vmem:[%s1 + $0x1c] sm:$0xf]
  %v25 = vld [vmem:[%s1 + $0x20] sm:$0xf]
  %v26 = vld [vmem:[%s1 + $0x24] sm:$0xf]
  %v27 = vld [vmem:[%s1 + $0x28] sm:$0xf]
  %v28 = vld [vmem:[%s1 + $0x2c] sm:$0xf]
  %v29 = vld [vmem:[%s1 + $0x30] sm:$0xf]
  %v30 = vld [vmem:[%s1 + $0x34] sm:$0xf]
  %v31 = vld [vmem:[%s1 + $0x38] sm:$0xf]
  %v32 = vld [vmem:[%s1 + $0x3c] sm:$0xf]
  %v33 = vld [vmem:[%s2] sm:$0x1]
  %v35 = vlaneseq
  %v36 = vshrl.u32 %v35, 7
  %v37 = vsub.s32 0, %v36
  %v38 = vrot.slane %v33, %v37
  %v42 = vunpack.c.l.b16 %v15
  %v43 = vunpack.c.l.b16 %v16
  %v44 = vpack.c.b16 %v43, %v42
  %v62 = vunpack.c.l.b16 %v17
  %v63 = vunpack.c.l.b16 %v18
  %v64 = vunpack.c.l.b16 %v19
  %v65 = vunpack.c.l.b16 %v20
  %v66 = vunpack.c.l.b16 %v21
  %v67 = vunpack.c.l.b16 %v22
  %v68 = vunpack.c.l.b16 %v23
  %v69 = vunpack.c.l.b16 %v24
  %v70 = vunpack.c.l.b16 %v25
  %v71 = vunpack.c.l.b16 %v26
  %v72 = vunpack.c.l.b16 %v27
  %v73 = vunpack.c.l.b16 %v28
  %v74 = vunpack.c.l.b16 %v29
  %v75 = vunpack.c.l.b16 %v30
  %v76 = vunpack.c.l.b16 %v31
  %v77 = vunpack.c.l.b16 %v32
  %v78 = vpack.c.b16 %v63, %v62
  %v79 = vpack.c.b16 %v65, %v64
  %v80 = vpack.c.b16 %v67, %v66
  %v81 = vpack.c.b16 %v69, %v68
  %v82 = vpack.c.b16 %v71, %v70
  %v83 = vpack.c.b16 %v73, %v72
  %v84 = vpack.c.b16 %v75, %v74
  %v85 = vpack.c.b16 %v77, %v76
  %94 = vmatprep.subr.bf16.mxu0 0
  %95 = vmatpush1.bf16.msra.mxu0 %v78
  %96 = vmatprep.subr.bf16.mxu0 0
  %97 = vmatpush1.bf16.msra.mxu0 %v79
  %98 = vmatprep.subr.bf16.mxu0 0
  %99 = vmatpush1.bf16.msra.mxu0 %v80
  %100 = vmatprep.subr.bf16.mxu0 0
  %101 = vmatpush1.bf16.msra.mxu0 %v81
  %102 = vmatprep.subr.bf16.mxu0 0
  %103 = vmatpush1.bf16.msra.mxu0 %v82
  %104 = vmatprep.subr.bf16.mxu0 0
  %105 = vmatpush1.bf16.msra.mxu0 %v83
  %106 = vmatprep.subr.bf16.mxu0 0
  %107 = vmatpush1.bf16.msra.mxu0 %v84
  %108 = vmatprep.subr.bf16.mxu0 0
  %109 = vmatpush1.bf16.msra.mxu0 %v85
  %110 = vmatprep.subr.bf16.mxu0 0
  %111 = vmatpush1.bf16.msra.mxu0 0
  %112 = vmatprep.subr.bf16.mxu0 0
  %113 = vmatpush1.bf16.msra.mxu0 0
  %114 = vmatprep.subr.bf16.mxu0 0
  %115 = vmatpush1.bf16.msra.mxu0 0
  %116 = vmatprep.subr.bf16.mxu0 0
  %117 = vmatpush1.bf16.msra.mxu0 0
  %118 = vmatprep.subr.bf16.mxu0 0
  %119 = vmatpush1.bf16.msra.mxu0 0
  %120 = vmatprep.subr.bf16.mxu0 0
  %121 = vmatpush1.bf16.msra.mxu0 0
  %122 = vmatprep.subr.bf16.mxu0 0
  %123 = vmatpush1.bf16.msra.mxu0 0
  %124 = vmatprep.subr.bf16.mxu0 0
  %125 = vmatpush1.bf16.msra.mxu0 0
  %126 = vmatprep.mubr.bf16.mxu0 0
  %127 = vmatmul.mubr.bf16.gmra.mrb[0].mxu0 %v44
  %v128 = vpop.f32.mrb[0].mxu0
  %v129 = vadd.f32 %v38, %v128
  %v130 = vpop.f32.mrb[0].mxu0
  %v131 = vpop.f32.mrb[0].mxu0
  %v132 = vadd.f32 %v38, %v131
  %v133 = vpop.f32.mrb[0].mxu0
  %134 = vdwg.mxu0
  %v135 = vmax.f32 %v129, 0.0
  %v136 = vmax.f32 %v132, 0.0
  %137 = vst [vmem:[%s3] sm:$0xff] %v135
  %138 = vst [vmem:[%s3 + $0x8] sm:$0xff] %v136
  // Predicated region
  $region14: #{linear_block_forward.1} parent=0 // pred_check
    _
  $region15: #{linear_block_forward.1} parent=0 // pred_check_branch
    %140 = sbr.rel (0) target = $region17
  $region16: #{linear_block_forward.1} parent=0 // pred_region
    _
  $region17: #{linear_block_forward.1} parent=0 // pred_fallthru
    _
  // Predicated region
  $region18: #{linear_block_forward.1} parent=0 // pred_check
    _
  $region19: #{linear_block_forward.1} parent=0 // pred_check_branch
    %142 = sbr.rel (0) target = $region21
  $region20: #{linear_block_forward.1} parent=0 // pred_region
    _
  $region21: #{linear_block_forward.1} parent=0 // pred_fallthru
    _

</llo_original>
